<compile_context>
chip_gen: v7x
topology: tpu7x:2x2x1
jax: 0.10.0
libtpu: 0.0.40
codegen_flags: <defaults>
</compile_context>

<pallas_src>
import functools

import jax
import jax.numpy as jnp
from jax.experimental import pallas as pl
from jax.experimental import pallas as _pl_unused  # keep namespace explicit
from jax.experimental.pallas import tpu as pltpu


_LANE = 128  # TPU vreg lane width (last dim)


def _round_up(v, m):
    return (v + m - 1) // m * m


def _sublane_pack(dtype):
    # sub-32-bit dtypes pack along sublanes: bf16 -> 16 rows/vreg, f32 -> 8
    return (32 // (jnp.dtype(dtype).itemsize * 8)) * 8


# ---------------------------------------------------------------------------
# Pallas kernel: fused two-layer GCN
#   out = A @ ( relu(A @ (X @ W1) + b1) @ W2 ) + b2
# Single invocation (no grid): all operands are whole-array VMEM blocks; the
# intermediate h1 lives entirely on-chip (vregs/VMEM), never touching HBM.
# ---------------------------------------------------------------------------
def fused_gcn2_kernel(adj_ref, x_ref, w1_ref, b1_ref, w2_ref, b2_ref, out_ref):
    cd = adj_ref.dtype  # MXU input dtype; accumulation stays f32

    # ----- layer 1: h1 = relu(A @ (X @ W1) + b1) -----
    xw1 = jnp.dot(x_ref[...], w1_ref[...], preferred_element_type=jnp.float32)
    h1 = jnp.dot(adj_ref[...], xw1.astype(cd),
                 preferred_element_type=jnp.float32) + b1_ref[...]
    h1 = jnp.maximum(h1, 0.0).astype(cd)

    # ----- layer 2: out = A @ (h1 @ W2) + b2  (hidden & out dims lane-padded) -----
    hw2 = jnp.dot(h1, w2_ref[...], preferred_element_type=jnp.float32)
    out = jnp.dot(adj_ref[...], hw2.astype(cd),
                  preferred_element_type=jnp.float32) + b2_ref[...]

    out_ref[...] = out.astype(out_ref.dtype)


def fused_two_layer_gcn(a_hat, x, w1, b1, w2, b2, *, compute_dtype=jnp.bfloat16):
    """Run both GCN layers in one pallas_call; returns f32 [N, out_size]."""
    n, f_in = x.shape
    hidden = w1.shape[1]
    f_out = w2.shape[1]

    cd = compute_dtype
    n_pad = _round_up(n, _sublane_pack(cd))   # clean sublane packing for any N
    hid_pad = _round_up(hidden, _LANE)        # lane-dense h1 / contraction dim
    f_out_pad = _round_up(f_out, _LANE)       # lane-dense output -> unmasked vst

    # Zero-padding is exact: padded hidden columns are 0 after bias+relu and meet
    # zero rows of the padded W2; padded output columns are sliced off below.
    adj = jnp.pad(a_hat, ((0, n_pad - n), (0, n_pad - n))).astype(cd)
    xp = jnp.pad(x, ((0, n_pad - n), (0, 0))).astype(cd)
    w1p = jnp.pad(w1, ((0, 0), (0, hid_pad - hidden))).astype(cd)
    b1p = jnp.pad(b1, ((0, 0), (0, hid_pad - hidden))).astype(jnp.float32)
    w2p = jnp.pad(w2, ((0, hid_pad - hidden), (0, f_out_pad - f_out))).astype(cd)
    b2p = jnp.pad(b2, ((0, 0), (0, f_out_pad - f_out))).astype(jnp.float32)

    # VMEM footprint hint (inputs + output + f32 temporaries), clamped to the
    # smallest physical VMEM across supported chips (v7x: 64 MiB per TC).
    est = (adj.size * 2 + xp.size * 2 + w1p.size * 2 + w2p.size * 2
           + (b1p.size + b2p.size) * 4
           + 4 * n_pad * max(hid_pad, f_out_pad) * 4)
    vmem_limit = int(min(64 * 2**20, max(32 * 2**20, 2 * est)))

    out_padded = pl.pallas_call(
        fused_gcn2_kernel,
        out_shape=jax.ShapeDtypeStruct((n_pad, f_out_pad), jnp.float32),
        # No grid / specs: whole arrays are single VMEM blocks (tiny shapes, one
        # launch, zero pipeline bookkeeping).
        compiler_params=pltpu.CompilerParams(vmem_limit_bytes=vmem_limit),
    )(adj, xp, w1p, b1p, w2p, b2p)

    return out_padded[:n, :f_out]


# ---------------------------------------------------------------------------
# Plain-JAX glue: GCN normalization of the graph (preprocessing, done once —
# mirrors cached=True in the PyTorch module).  Matches PyG gcn_norm with unit
# edge weights: duplicate edges accumulate, existing self-loops are replaced by
# exactly one unit self-loop per node (add_remaining_self_loops), degrees taken
# at the target (col) node.
# ---------------------------------------------------------------------------
def gcn_normalize(edge_index, num_nodes):
    src, dst = edge_index[0], edge_index[1]
    off_diag = (src != dst).astype(jnp.float32)
    # adj[i, j] = total weight of edges j -> i (duplicates counted)
    adj = jnp.zeros((num_nodes, num_nodes), jnp.float32).at[dst, src].add(off_diag)
    # exactly one self-loop of weight 1 per node
    adj = adj + jnp.eye(num_nodes, dtype=jnp.float32)
    deg = adj.sum(axis=1)                                  # in-degree at target i
    dinv_sqrt = jnp.where(deg > 0, jax.lax.rsqrt(deg), 0.0)
    return dinv_sqrt[:, None] * adj * dinv_sqrt[None, :]


# ---------------------------------------------------------------------------
# Full GAT (two GCNConv layers) forward.  A_hat is precomputed & passed in.
# ---------------------------------------------------------------------------
def gat_forward(a_hat, x, params, *, compute_dtype=jnp.bfloat16):
    # TODO(synk): F.dropout(p=0.9) only acts in training mode; eval-mode forward
    # (identity) is implemented here.
    return fused_two_layer_gcn(
        a_hat, x,
        params["w1"], params["b1"], params["w2"], params["b2"],
        compute_dtype=compute_dtype)


# ---------------------------------------------------------------------------
# Deterministic parameter init (Glorot, as in torch_geometric GCNConv)
# ---------------------------------------------------------------------------
def init_params(key, feature_length, hidden, out_size):
    k1, k2 = jax.random.split(key)

    def glorot(k, fan_in, fan_out):
        limit = jnp.sqrt(6.0 / (fan_in + fan_out))
        return jax.random.uniform(k, (fan_in, fan_out), jnp.float32, -limit, limit)

    return {
        "w1": glorot(k1, feature_length, hidden),
        "b1": jnp.zeros((1, hidden), jnp.float32),
        "w2": glorot(k2, hidden, out_size),
        "b2": jnp.zeros((1, out_size), jnp.float32),
    }


if __name__ == "__main__":
    # Small, deterministic example: 32 nodes, 16 input features, hidden 16
    # (GCNConv(feature_length, 16) hardcodes 16), out_size 8.
    N, FEATURE_LEN, HIDDEN, OUT_SIZE = 32, 16, 16, 8

    key = jax.random.PRNGKey(0)
    kx, kp = jax.random.split(key)

    x = jax.random.normal(kx, (N, FEATURE_LEN), jnp.float32)

    # Deterministic ring-ish graph (symmetric edge list), shape [2, E]
    src = jnp.arange(N, dtype=jnp.int32)
    dst1 = (src + 1) % N
    dst3 = (src + 3) % N
    edge_src = jnp.concatenate([src, dst1, src, dst3])
    edge_dst = jnp.concatenate([dst1, src, dst3, src])
    edge_index = jnp.stack([edge_src, edge_dst], axis=0)

    params = init_params(kp, FEATURE_LEN, HIDDEN, OUT_SIZE)

    # cached=True semantics: normalize the adjacency ONCE, outside the hot path.
    a_hat = gcn_normalize(edge_index, N)

    fwd = jax.jit(functools.partial(gat_forward, compute_dtype=jnp.bfloat16))
    out = fwd(a_hat, x, params)
    jax.block_until_ready(out)

    assert out.shape == (N, OUT_SIZE), out.shape
    assert out.dtype == jnp.float32
    assert bool(jnp.all(jnp.isfinite(out)))
    print("KERNEL_OK")
</pallas_src>

<mosaic_0001>
module attributes {stable_mosaic.version = 11 : i64} {
  func.func @fused_gcn2_kernel(%arg0: memref<32x32xbf16, #tpu.memory_space<vmem>>, %arg1: memref<32x16xbf16, #tpu.memory_space<vmem>>, %arg2: memref<16x128xbf16, #tpu.memory_space<vmem>>, %arg3: memref<1x128xf32, #tpu.memory_space<vmem>>, %arg4: memref<128x128xbf16, #tpu.memory_space<vmem>>, %arg5: memref<1x128xf32, #tpu.memory_space<vmem>>, %arg6: memref<32x128xf32, #tpu.memory_space<vmem>>) attributes {dimension_semantics = [], scalar_prefetch = 0 : i64, scratch_operands = 0 : i64, tpu.core_type = #tpu.core_type<tc>} {
    %c0 = arith.constant 0 : index
    %c0_0 = arith.constant 0 : index
    %0 = vector.load %arg1[%c0, %c0_0] : memref<32x16xbf16, #tpu.memory_space<vmem>>, vector<32x16xbf16>
    %c0_1 = arith.constant 0 : index
    %c0_2 = arith.constant 0 : index
    %1 = vector.load %arg2[%c0_1, %c0_2] : memref<16x128xbf16, #tpu.memory_space<vmem>>, vector<16x128xbf16>
    %cst = arith.constant dense<0.000000e+00> : vector<32x128xf32>
    %2 = tpu.matmul %0, %1, %cst {dimension_numbers = #tpu.dot_dimension_numbers<[1], [0], [0], [1], [0, 0, 1, 1], [], []>} : vector<32x16xbf16>, vector<16x128xbf16>, vector<32x128xf32> -> vector<32x128xf32>
    %c0_3 = arith.constant 0 : index
    %c0_4 = arith.constant 0 : index
    %3 = vector.load %arg0[%c0_3, %c0_4] : memref<32x32xbf16, #tpu.memory_space<vmem>>, vector<32x32xbf16>
    %4 = arith.truncf %2 : vector<32x128xf32> to vector<32x128xbf16>
    %cst_5 = arith.constant dense<0.000000e+00> : vector<32x128xf32>
    %5 = tpu.matmul %3, %4, %cst_5 {dimension_numbers = #tpu.dot_dimension_numbers<[1], [0], [0], [1], [0, 0, 1, 1], [], []>} : vector<32x32xbf16>, vector<32x128xbf16>, vector<32x128xf32> -> vector<32x128xf32>
    %c0_6 = arith.constant 0 : index
    %c0_7 = arith.constant 0 : index
    %6 = vector.load %arg3[%c0_6, %c0_7] : memref<1x128xf32, #tpu.memory_space<vmem>>, vector<1x128xf32>
    %7 = vector.broadcast %6 : vector<1x128xf32> to vector<32x128xf32>
    %8 = arith.addf %5, %7 : vector<32x128xf32>
    %cst_8 = arith.constant 0.000000e+00 : f32
    %9 = vector.broadcast %cst_8 : f32 to vector<32x128xf32>
    %10 = arith.maximumf %8, %9 : vector<32x128xf32>
    %11 = arith.truncf %10 : vector<32x128xf32> to vector<32x128xbf16>
    %c0_9 = arith.constant 0 : index
    %c0_10 = arith.constant 0 : index
    %12 = vector.load %arg4[%c0_9, %c0_10] : memref<128x128xbf16, #tpu.memory_space<vmem>>, vector<128x128xbf16>
    %cst_11 = arith.constant dense<0.000000e+00> : vector<32x128xf32>
    %13 = tpu.matmul %11, %12, %cst_11 {dimension_numbers = #tpu.dot_dimension_numbers<[1], [0], [0], [1], [0, 0, 1, 1], [], []>} : vector<32x128xbf16>, vector<128x128xbf16>, vector<32x128xf32> -> vector<32x128xf32>
    %c0_12 = arith.constant 0 : index
    %c0_13 = arith.constant 0 : index
    %14 = vector.load %arg0[%c0_12, %c0_13] : memref<32x32xbf16, #tpu.memory_space<vmem>>, vector<32x32xbf16>
    %15 = arith.truncf %13 : vector<32x128xf32> to vector<32x128xbf16>
    %cst_14 = arith.constant dense<0.000000e+00> : vector<32x128xf32>
    %16 = tpu.matmul %14, %15, %cst_14 {dimension_numbers = #tpu.dot_dimension_numbers<[1], [0], [0], [1], [0, 0, 1, 1], [], []>} : vector<32x32xbf16>, vector<32x128xbf16>, vector<32x128xf32> -> vector<32x128xf32>
    %c0_15 = arith.constant 0 : index
    %c0_16 = arith.constant 0 : index
    %17 = vector.load %arg5[%c0_15, %c0_16] : memref<1x128xf32, #tpu.memory_space<vmem>>, vector<1x128xf32>
    %18 = vector.broadcast %17 : vector<1x128xf32> to vector<32x128xf32>
    %19 = arith.addf %16, %18 : vector<32x128xf32>
    %c0_17 = arith.constant 0 : index
    %c0_18 = arith.constant 0 : index
    %20 = vector.load %arg6[%c0_17, %c0_18] : memref<32x128xf32, #tpu.memory_space<vmem>>, vector<32x128xf32>
    tpu.vector_store %arg6[%c0_17, %c0_18], %19 {strides = array<i32>} : memref<32x128xf32, #tpu.memory_space<vmem>>, vector<32x128xf32>,
    return
  }
}

</mosaic_0001>

<llo_original>
// kernel: gat_forward.1
$region0: #{gat_forward.1}
  #allocation0 [shape = 'u32[]', space=smem, size = 0x4, offset = 0x4, fixed_abs, tag = 'smem constant byte address 0x4 - core index']
  #allocation1 [shape = 'u32[144,128]{1,0:T(1,128)}', space=vmem, size = 0x12000, scoped, tag = 'internal scratch']
  %s0 = inlined_call_operand.vmem [shape: bf16[32,32], index: 0, kind: input, shape index: {}]
  %s1 = inlined_call_operand.vmem [shape: bf16[32,16], index: 1, kind: input, shape index: {}]
  %s2 = inlined_call_operand.vmem [shape: bf16[16,128], index: 2, kind: input, shape index: {}]
  %s3 = inlined_call_operand.vmem [shape: f32[1,128], index: 3, kind: input, shape index: {}]
  %s4 = inlined_call_operand.vmem [shape: bf16[128,128], index: 4, kind: input, shape index: {}]
  %s5 = inlined_call_operand.vmem [shape: f32[1,128], index: 5, kind: input, shape index: {}]
  %s6 = inlined_call_operand.vmem [shape: f32[32,128], index: 6, kind: output, shape index: {}]
  %s7 = sld [smem:[#allocation0]]
  $region34: #{gat_forward.1} parent=0
    _
  %s9 = ssub.s32 1, %s7
  %s10 = scalar_select 0, %s9, %s7
  // Predicated region
  $region2: #{gat_forward.1} parent=0 // pred_check
    _
  $region3: #{gat_forward.1} parent=0 // pred_check_branch
    %12 = sbr.rel (0) target = $region5
  $region4: #{gat_forward.1} parent=0 // pred_region
    _
  $region5: #{gat_forward.1} parent=0 // pred_fallthru
    _
  // Predicated region
  $region6: #{gat_forward.1} parent=0 // pred_check
    _
  $region7: #{gat_forward.1} parent=0 // pred_check_branch
    %14 = sbr.rel (0) target = $region9
  $region8: #{gat_forward.1} parent=0 // pred_region
    _
  $region9: #{gat_forward.1} parent=0 // pred_fallthru
    _
  // Predicated region
  $region10: #{gat_forward.1} parent=0 // pred_check
    _
  $region11: #{gat_forward.1} parent=0 // pred_check_branch
    %16 = sbr.rel (0) target = $region13
  $region12: #{gat_forward.1} parent=0 // pred_region
    _
  $region13: #{gat_forward.1} parent=0 // pred_fallthru
    _
  // Predicated region
  $region14: #{gat_forward.1} parent=0 // pred_check
    _
  $region15: #{gat_forward.1} parent=0 // pred_check_branch
    %18 = sbr.rel (0) target = $region17
  $region16: #{gat_forward.1} parent=0 // pred_region
    _
  $region17: #{gat_forward.1} parent=0 // pred_fallthru
    _
  // Predicated region
  $region18: #{gat_forward.1} parent=0 // pred_check
    _
  $region19: #{gat_forward.1} parent=0 // pred_check_branch
    %20 = sbr.rel (0) target = $region21
  $region20: #{gat_forward.1} parent=0 // pred_region
    _
  $region21: #{gat_forward.1} parent=0 // pred_fallthru
    _
  // Predicated region
  $region22: #{gat_forward.1} parent=0 // pred_check
    _
  $region23: #{gat_forward.1} parent=0 // pred_check_branch
    %22 = sbr.rel (0) target = $region25
  $region24: #{gat_forward.1} parent=0 // pred_region
    _
  $region25: #{gat_forward.1} parent=0 // pred_fallthru
    _
  %v24 = vld [vmem:[%s1] sm:$0xf]
  %v25 = vld [vmem:[%s1 + $0x4] sm:$0xf]
  %v26 = vld [vmem:[%s1 + $0x8] sm:$0xf]
  %v27 = vld [vmem:[%s1 + $0xc] sm:$0xf]
  %v28 = vld [vmem:[%s2] sm:$0xf]
  %v29 = vld [vmem:[%s2 + $0x4] sm:$0xf]
  %v34 = vunpack.c.l.b16 %v24
  %v35 = vunpack.c.l.b16 %v25
  %v36 = vunpack.c.l.b16 %v26
  %v37 = vunpack.c.l.b16 %v27
  %v38 = vpack.c.b16 %v35, %v34
  %v39 = vpack.c.b16 %v37, %v36
  %v42 = vunpack.c.l.b16 %v28
  %v43 = vunpack.c.l.b16 %v29
  %v44 = vpack.c.b16 %v43, %v42
  %vm46 = vcmask 130048
  %v48 = vsel %vm46, %v38, 0
  %v51 = vsel %vm46, %v39, 0
  %53 = vmatprep.subr.bf16.mxu0 0
  %54 = vmatpush1.bf16.msra.mxu0 %v44
  %55 = vmatprep.subr.bf16.mxu0 0
  %56 = vmatpush1.bf16.msra.mxu0 0
  %57 = vmatprep.subr.bf16.mxu0 0
  %58 = vmatpush1.bf16.msra.mxu0 0
  %59 = vmatprep.subr.bf16.mxu0 0
  %60 = vmatpush1.bf16.msra.mxu0 0
  %61 = vmatprep.subr.bf16.mxu0 0
  %62 = vmatpush1.bf16.msra.mxu0 0
  %63 = vmatprep.subr.bf16.mxu0 0
  %64 = vmatpush1.bf16.msra.mxu0 0
  %65 = vmatprep.subr.bf16.mxu0 0
  %66 = vmatpush1.bf16.msra.mxu0 0
  %67 = vmatprep.subr.bf16.mxu0 0
  %68 = vmatpush1.bf16.msra.mxu0 0
  %69 = vmatprep.subr.bf16.mxu0 0
  %70 = vmatpush1.bf16.msra.mxu0 0
  %71 = vmatprep.subr.bf16.mxu0 0
  %72 = vmatpush1.bf16.msra.mxu0 0
  %73 = vmatprep.subr.bf16.mxu0 0
  %74 = vmatpush1.bf16.msra.mxu0 0
  %75 = vmatprep.subr.bf16.mxu0 0
  %76 = vmatpush1.bf16.msra.mxu0 0
  %77 = vmatprep.subr.bf16.mxu0 0
  %78 = vmatpush1.bf16.msra.mxu0 0
  %79 = vmatprep.subr.bf16.mxu0 0
  %80 = vmatpush1.bf16.msra.mxu0 0
  %81 = vmatprep.subr.bf16.mxu0 0
  %82 = vmatpush1.bf16.msra.mxu0 0
  %83 = vmatprep.subr.bf16.mxu0 0
  %84 = vmatpush1.bf16.msra.mxu0 0
  %85 = vmatprep.mubr.bf16.mxu0 0
  %86 = vmatmul.mubr.bf16.gmra.mrb[0].mxu0 %v48
  %v87 = vpop.f32.mrb[0].mxu0
  %v88 = vadd.f32 0.0, %v87
  %v89 = vpop.f32.mrb[0].mxu0
  %v90 = vpop.f32.mrb[0].mxu0
  %v91 = vadd.f32 0.0, %v90
  %v92 = vpop.f32.mrb[0].mxu0
  %93 = vmatprep.mubr.bf16.mxu0 0
  %94 = vmatmul.mubr.bf16.gmra.mrb[0].mxu0 %v51
  %v95 = vpop.f32.mrb[0].mxu0
  %v96 = vadd.f32 0.0, %v95
  %v97 = vpop.f32.mrb[0].mxu0
  %v98 = vpop.f32.mrb[0].mxu0
  %v99 = vadd.f32 0.0, %v98
  %v100 = vpop.f32.mrb[0].mxu0
  %101 = vdwg.mxu0
  %v102 = vld [vmem:[%s0] sm:$0xf]
  %v103 = vld [vmem:[%s0 + $0x4] sm:$0xf]
  %v104 = vld [vmem:[%s0 + $0x8] sm:$0xf]
  %v105 = vld [vmem:[%s0 + $0xc] sm:$0xf]
  %v106 = vpack.c.bf16 %v91, %v88
  %v107 = vpack.c.bf16 %v99, %v96
  %v108 = vld [vmem:[%s3] sm:$0x1]
  %v110 = vlaneseq
  %v111 = vshrl.u32 %v110, 7
  %v112 = vsub.s32 0, %v111
  %v113 = vrot.slane %v108, %v112
  %v119 = vunpack.c.l.b16 %v102
  %v120 = vunpack.c.l.b16 %v103
  %v121 = vunpack.c.l.b16 %v104
  %v122 = vunpack.c.l.b16 %v105
  %v123 = vpack.c.b16 %v120, %v119
  %v124 = vpack.c.b16 %v122, %v121
  %vm125 = vcmask 261120
  %v127 = vsel %vm125, %v123, 0
  %v130 = vsel %vm125, %v124, 0
  %132 = vmatprep.subr.bf16.mxu0 0
  %133 = vmatpush1.bf16.msra.mxu0 %v106
  %134 = vmatprep.subr.bf16.mxu0 0
  %135 = vmatpush1.bf16.msra.mxu0 %v107
  %136 = vmatprep.subr.bf16.mxu0 0
  %137 = vmatpush1.bf16.msra.mxu0 0
  %138 = vmatprep.subr.bf16.mxu0 0
  %139 = vmatpush1.bf16.msra.mxu0 0
  %140 = vmatprep.subr.bf16.mxu0 0
  %141 = vmatpush1.bf16.msra.mxu0 0
  %142 = vmatprep.subr.bf16.mxu0 0
  %143 = vmatpush1.bf16.msra.mxu0 0
  %144 = vmatprep.subr.bf16.mxu0 0
  %145 = vmatpush1.bf16.msra.mxu0 0
  %146 = vmatprep.subr.bf16.mxu0 0
  %147 = vmatpush1.bf16.msra.mxu0 0
  %148 = vmatprep.subr.bf16.mxu0 0
  %149 = vmatpush1.bf16.msra.mxu0 0
  %150 = vmatprep.subr.bf16.mxu0 0
  %151 = vmatpush1.bf16.msra.mxu0 0
  %152 = vmatprep.subr.bf16.mxu0 0
  %153 = vmatpush1.bf16.msra.mxu0 0
  %154 = vmatprep.subr.bf16.mxu0 0
  %155 = vmatpush1.bf16.msra.mxu0 0
  %156 = vmatprep.subr.bf16.mxu0 0
  %157 = vmatpush1.bf16.msra.mxu0 0
  %158 = vmatprep.subr.bf16.mxu0 0
  %159 = vmatpush1.bf16.msra.mxu0 0
  %160 = vmatprep.subr.bf16.mxu0 0
  %161 = vmatpush1.bf16.msra.mxu0 0
  %162 = vmatprep.subr.bf16.mxu0 0
  %163 = vmatpush1.bf16.msra.mxu0 0
  %164 = vmatprep.mubr.bf16.mxu0 0
  %165 = vmatmul.mubr.bf16.gmra.mrb[0].mxu0 %v127
  %v166 = vpop.f32.mrb[0].mxu0
  %v167 = vadd.f32 %v113, %v166
  %v168 = vpop.f32.mrb[0].mxu0
  %v169 = vpop.f32.mrb[0].mxu0
  %v170 = vadd.f32 %v113, %v169
  %v171 = vpop.f32.mrb[0].mxu0
  %172 = vmatprep.mubr.bf16.mxu0 0
  %173 = vmatmul.mubr.bf16.gmra.mrb[0].mxu0 %v130
  %v174 = vpop.f32.mrb[0].mxu0
  %v175 = vadd.f32 %v113, %v174
  %v176 = vpop.f32.mrb[0].mxu0
  %v177 = vpop.f32.mrb[0].mxu0
  %v178 = vadd.f32 %v113, %v177
  %v179 = vpop.f32.mrb[0].mxu0
  %180 = vdwg.mxu0
  %v181 = vmax.f32 %v167, 0.0
  %v182 = vmax.f32 %v170, 0.0
  %v183 = vmax.f32 %v175, 0.0
  %v184 = vmax.f32 %v178, 0.0
  %v185 = vpack.c.bf16 %v182, %v181
  %v186 = vpack.c.bf16 %v184, %v183
  %v187 = vld [vmem:[%s4] sm:$0xf]
  %v188 = vld [vmem:[%s4 + $0x4] sm:$0xf]
  %v189 = vld [vmem:[%s4 + $0x8] sm:$0xf]
  %v190 = vld [vmem:[%s4 + $0xc] sm:$0xf]
  %v191 = vld [vmem:[%s4 + $0x10] sm:$0xf]
  %v192 = vld [vmem:[%s4 + $0x14] sm:$0xf]
  %v193 = vld [vmem:[%s4 + $0x18] sm:$0xf]
  %v194 = vld [vmem:[%s4 + $0x1c] sm:$0xf]
  %v195 = vld [vmem:[%s4 + $0x20] sm:$0xf]
  %v196 = vld [vmem:[%s4 + $0x24] sm:$0xf]
  %v197 = vld [vmem:[%s4 + $0x28] sm:$0xf]
  %v198 = vld [vmem:[%s4 + $0x2c] sm:$0xf]
  %v199 = vld [vmem:[%s4 + $0x30] sm:$0xf]
  %v200 = vld [vmem:[%s4 + $0x34] sm:$0xf]
  %v201 = vld [vmem:[%s4 + $0x38] sm:$0xf]
  %v202 = vld [vmem:[%s4 + $0x3c] sm:$0xf]
  %v219 = vunpack.c.l.b16 %v187
  %v220 = vunpack.c.l.b16 %v188
  %v221 = vunpack.c.l.b16 %v189
  %v222 = vunpack.c.l.b16 %v190
  %v223 = vunpack.c.l.b16 %v191
  %v224 = vunpack.c.l.b16 %v192
  %v225 = vunpack.c.l.b16 %v193
  %v226 = vunpack.c.l.b16 %v194
  %v227 = vunpack.c.l.b16 %v195
  %v228 = vunpack.c.l.b16 %v196
  %v229 = vunpack.c.l.b16 %v197
  %v230 = vunpack.c.l.b16 %v198
  %v231 = vunpack.c.l.b16 %v199
  %v232 = vunpack.c.l.b16 %v200
  %v233 = vunpack.c.l.b16 %v201
  %v234 = vunpack.c.l.b16 %v202
  %v235 = vpack.c.b16 %v220, %v219
  %v236 = vpack.c.b16 %v222, %v221
  %v237 = vpack.c.b16 %v224, %v223
  %v238 = vpack.c.b16 %v226, %v225
  %v239 = vpack.c.b16 %v228, %v227
  %v240 = vpack.c.b16 %v230, %v229
  %v241 = vpack.c.b16 %v232, %v231
  %v242 = vpack.c.b16 %v234, %v233
  %251 = vmatprep.subr.bf16.mxu0 0
  %252 = vmatpush1.bf16.msra.mxu0 %v235
  %253 = vmatprep.subr.bf16.mxu0 0
  %254 = vmatpush1.bf16.msra.mxu0 %v236
  %255 = vmatprep.subr.bf16.mxu0 0
  %256 = vmatpush1.bf16.msra.mxu0 %v237
  %257 = vmatprep.subr.bf16.mxu0 0
  %258 = vmatpush1.bf16.msra.mxu0 %v238
  %259 = vmatprep.subr.bf16.mxu0 0
  %260 = vmatpush1.bf16.msra.mxu0 %v239
  %261 = vmatprep.subr.bf16.mxu0 0
  %262 = vmatpush1.bf16.msra.mxu0 %v240
  %263 = vmatprep.subr.bf16.mxu0 0
  %264 = vmatpush1.bf16.msra.mxu0 %v241
  %265 = vmatprep.subr.bf16.mxu0 0
  %266 = vmatpush1.bf16.msra.mxu0 %v242
  %267 = vmatprep.subr.bf16.mxu0 0
  %268 = vmatpush1.bf16.msra.mxu0 0
  %269 = vmatprep.subr.bf16.mxu0 0
  %270 = vmatpush1.bf16.msra.mxu0 0
  %271 = vmatprep.subr.bf16.mxu0 0
  %272 = vmatpush1.bf16.msra.mxu0 0
  %273 = vmatprep.subr.bf16.mxu0 0
  %274 = vmatpush1.bf16.msra.mxu0 0
  %275 = vmatprep.subr.bf16.mxu0 0
  %276 = vmatpush1.bf16.msra.mxu0 0
  %277 = vmatprep.subr.bf16.mxu0 0
  %278 = vmatpush1.bf16.msra.mxu0 0
  %279 = vmatprep.subr.bf16.mxu0 0
  %280 = vmatpush1.bf16.msra.mxu0 0
  %281 = vmatprep.subr.bf16.mxu0 0
  %282 = vmatpush1.bf16.msra.mxu0 0
  %283 = vmatprep.mubr.bf16.mxu0 0
  %284 = vmatmul.mubr.bf16.gmra.mrb[0].mxu0 %v185
  %v285 = vpop.f32.mrb[0].mxu0
  %v286 = vadd.f32 0.0, %v285
  %v287 = vpop.f32.mrb[0].mxu0
  %v288 = vpop.f32.mrb[0].mxu0
  %v289 = vadd.f32 0.0, %v288
  %v290 = vpop.f32.mrb[0].mxu0
  %291 = vmatprep.mubr.bf16.mxu0 0
  %292 = vmatmul.mubr.bf16.gmra.mrb[0].mxu0 %v186
  %v293 = vpop.f32.mrb[0].mxu0
  %v294 = vadd.f32 0.0, %v293
  %v295 = vpop.f32.mrb[0].mxu0
  %v296 = vpop.f32.mrb[0].mxu0
  %v297 = vadd.f32 0.0, %v296
  %v298 = vpop.f32.mrb[0].mxu0
  %299 = vdwg.mxu0
  %v300 = vpack.c.bf16 %v289, %v286
  %v301 = vpack.c.bf16 %v297, %v294
  %v302 = vld [vmem:[%s5] sm:$0x1]
  %v304 = vlaneseq
  %v305 = vshrl.u32 %v304, 7
  %v306 = vsub.s32 0, %v305
  %v307 = vrot.slane %v302, %v306
  %309 = vmatprep.subr.bf16.mxu0 0
  %310 = vmatpush1.bf16.msra.mxu0 %v300
  %311 = vmatprep.subr.bf16.mxu0 0
  %312 = vmatpush1.bf16.msra.mxu0 %v301
  %313 = vmatprep.subr.bf16.mxu0 0
  %314 = vmatpush1.bf16.msra.mxu0 0
  %315 = vmatprep.subr.bf16.mxu0 0
  %316 = vmatpush1.bf16.msra.mxu0 0
  %317 = vmatprep.subr.bf16.mxu0 0
  %318 = vmatpush1.bf16.msra.mxu0 0
  %319 = vmatprep.subr.bf16.mxu0 0
  %320 = vmatpush1.bf16.msra.mxu0 0
  %321 = vmatprep.subr.bf16.mxu0 0
  %322 = vmatpush1.bf16.msra.mxu0 0
  %323 = vmatprep.subr.bf16.mxu0 0
  %324 = vmatpush1.bf16.msra.mxu0 0
  %325 = vmatprep.subr.bf16.mxu0 0
  %326 = vmatpush1.bf16.msra.mxu0 0
  %327 = vmatprep.subr.bf16.mxu0 0
  %328 = vmatpush1.bf16.msra.mxu0 0
  %329 = vmatprep.subr.bf16.mxu0 0
  %330 = vmatpush1.bf16.msra.mxu0 0
  %331 = vmatprep.subr.bf16.mxu0 0
  %332 = vmatpush1.bf16.msra.mxu0 0
  %333 = vmatprep.subr.bf16.mxu0 0
  %334 = vmatpush1.bf16.msra.mxu0 0
  %335 = vmatprep.subr.bf16.mxu0 0
  %336 = vmatpush1.bf16.msra.mxu0 0
  %337 = vmatprep.subr.bf16.mxu0 0
  %338 = vmatpush1.bf16.msra.mxu0 0
  %339 = vmatprep.subr.bf16.mxu0 0
  %340 = vmatpush1.bf16.msra.mxu0 0
  %341 = vmatprep.mubr.bf16.mxu0 0
  %342 = vmatmul.mubr.bf16.gmra.mrb[0].mxu0 %v127
  %v343 = vpop.f32.mrb[0].mxu0
  %v344 = vadd.f32 %v307, %v343
  %v345 = vpop.f32.mrb[0].mxu0
  %v346 = vpop.f32.mrb[0].mxu0
  %v347 = vadd.f32 %v307, %v346
  %v348 = vpop.f32.mrb[0].mxu0
  %349 = vmatprep.mubr.bf16.mxu0 0
  %350 = vmatmul.mubr.bf16.gmra.mrb[0].mxu0 %v130
  %v351 = vpop.f32.mrb[0].mxu0
  %v352 = vadd.f32 %v307, %v351
  %v353 = vpop.f32.mrb[0].mxu0
  %v354 = vpop.f32.mrb[0].mxu0
  %v355 = vadd.f32 %v307, %v354
  %v356 = vpop.f32.mrb[0].mxu0
  %357 = vdwg.mxu0
  %358 = vst [vmem:[%s6] sm:$0xff] %v344
  %359 = vst [vmem:[%s6 + $0x8] sm:$0xff] %v347
  %360 = vst [vmem:[%s6 + $0x10] sm:$0xff] %v352
  %361 = vst [vmem:[%s6 + $0x18] sm:$0xff] %v355
  // Predicated region
  $region26: #{gat_forward.1} parent=0 // pred_check
    _
  $region27: #{gat_forward.1} parent=0 // pred_check_branch
    %363 = sbr.rel (0) target = $region29
  $region28: #{gat_forward.1} parent=0 // pred_region
    _
  $region29: #{gat_forward.1} parent=0 // pred_fallthru
    _
  // Predicated region
  $region30: #{gat_forward.1} parent=0 // pred_check
    _
  $region31: #{gat_forward.1} parent=0 // pred_check_branch
    %365 = sbr.rel (0) target = $region33
  $region32: #{gat_forward.1} parent=0 // pred_region
    _
  $region33: #{gat_forward.1} parent=0 // pred_fallthru
    _

</llo_original>
